<compile_context>
chip_gen: v7x
topology: tpu7x:2x2x1
jax: 0.10.0
libtpu: 0.0.40
codegen_flags: <defaults>
</compile_context>

<pallas_src>
import functools

import numpy as np
import jax
import jax.numpy as jnp
from jax import lax
from jax.experimental import pallas as pl
from jax.experimental.pallas import tpu as pltpu


_GROUP = 8  # scatter unroll factor: one dense (8, C) source load per group


def _padded_vmem_bytes(shape, itemsize=4):
    """Bytes a f32 buffer of `shape` occupies in VMEM (8x128 tile padding)."""
    if len(shape) == 1:
        lead, s, l = 1, 1, shape[0]
    else:
        *lead_dims, s, l = shape
        lead = int(np.prod(lead_dims)) if lead_dims else 1
    s_pad = -(-s // 8) * 8
    l_pad = -(-l // 128) * 128
    return lead * s_pad * l_pad * itemsize


def _project_kernel(H, W, index_ref, m_ref, kt_ref, depth_ref, out_ref):
    """coords = (K R Kinv) @ [gx; gy; 1] + (K T)/depth ; p = clamp(coords[:2]/coords[2]).int

    Vectorized over the full (H, W) tile (all sublanes used)."""
    b = pl.program_id(0)
    gx = index_ref[0]                    # (H, W) f32
    gy = index_ref[1]
    # Exact reciprocal: keeps the integer indices bit-identical to the PyTorch ref.
    invd = 1.0 / depth_ref[...]          # (H, W)

    def row(i):
        return (m_ref[b, 3 * i + 0] * gx + m_ref[b, 3 * i + 1] * gy
                + m_ref[b, 3 * i + 2] + kt_ref[b, i] * invd)

    x0 = row(0)
    x1 = row(1)
    x2 = row(2)
    hi = float(H - 1)                    # original module clamps both coords to H-1 (H == W)
    out_ref[0] = jnp.clip(x0 / x2, 0.0, hi).astype(jnp.int32)   # trunc == floor (>= 0)
    out_ref[1] = jnp.clip(x1 / x2, 0.0, hi).astype(jnp.int32)


def _scatter_pool_kernel(H, W, C, fill_value,
                         idx_ref, img_ref, out_ref, proj_ref, tmp_ref):
    HW = H * W
    b = pl.program_id(0)
    base0 = (2 * b) * HW       # offset of the p0 (row) plane for this batch
    base1 = (2 * b + 1) * HW   # offset of the p1 (col) plane for this batch

    # ---- scatter (sequential -> last write wins, like the PyTorch per-pixel loop) ----
    proj_ref[...] = jnp.full((H, W, C), fill_value, dtype=jnp.float32)

    n_groups = HW // _GROUP

    def body(g, carry):
        j0 = pl.multiple_of(g * _GROUP, _GROUP)
        src = img_ref[pl.ds(j0, _GROUP), :]          # one dense (8, C) load per group
        for k in range(_GROUP):                      # 8-way static unroll
            r0 = idx_ref[base0 + j0 + k]             # SMEM scalar reads
            r1 = idx_ref[base1 + j0 + k]
            proj_ref[r0, pl.ds(r1, 1), :] = src[k:k + 1, :]
        return carry

    lax.fori_loop(0, n_groups, body, 0)

    # static tail (< _GROUP pixels) when HW is not a multiple of 8
    for j in range(n_groups * _GROUP, HW):
        r0 = idx_ref[base0 + j]
        r1 = idx_ref[base1 + j]
        proj_ref[r0, pl.ds(r1, 1), :] = img_ref[pl.ds(j, 1), :]

    # ---- 2x2 max pool (kernel_size=2, stride=2), fully vectorized ----
    # pass 1: max over row (h) pairs -> (H//2, W, C)
    tmp_ref[...] = jnp.maximum(proj_ref[pl.ds(0, H // 2, stride=2), :, :],
                               proj_ref[pl.ds(1, H // 2, stride=2), :, :])
    # pass 2: max over column (w) pairs -> (H//2, W//2, C)
    out_ref[...] = jnp.maximum(tmp_ref[:, pl.ds(0, W // 2, stride=2), :],
                               tmp_ref[:, pl.ds(1, W // 2, stride=2), :])


def epipolar_propagation(image, depth, T, R, K, Kinv, fill_empty_with_ones=False):
    B, C, H, W = image.shape
    assert H == W                  # same assumption as the PyTorch module
    assert H % 2 == 0 and W % 2 == 0
    HW = H * W

    # ----- glue: tiny 3x3 parameter algebra + layout changes -----
    K = jnp.asarray(K, jnp.float32)
    Kinv = jnp.asarray(Kinv, jnp.float32)
    gx, gy = jnp.meshgrid(jnp.arange(H), jnp.arange(W), indexing="ij")
    index_arr = jnp.stack([gx.astype(jnp.float32),
                           gy.astype(jnp.float32),
                           jnp.ones((H, W), jnp.float32)], axis=0)       # (3, H, W)
    M = jnp.einsum("ij,bjk,kl->bil", K, R.astype(jnp.float32), Kinv)      # (B, 3, 3)
    KT = jnp.einsum("ij,bjk->bik", K, T.astype(jnp.float32))[..., 0]      # (B, 3)
    m_flat = M.reshape(B, 9).astype(jnp.float32)
    depth_f = depth.reshape(B, H, W).astype(jnp.float32)

    # ----- kernel A: per-pixel projection -> clamped integer target coords -----
    pcoord = pl.pallas_call(
        functools.partial(_project_kernel, H, W),
        out_shape=jax.ShapeDtypeStruct((B, 2, H, W), jnp.int32),
        grid=(B,),
        in_specs=[
            pl.BlockSpec((3, H, W), lambda b: (0, 0, 0)),
            pl.BlockSpec(memory_space=pltpu.MemorySpace.SMEM),
            pl.BlockSpec(memory_space=pltpu.MemorySpace.SMEM),
            pl.BlockSpec((None, H, W), lambda b: (b, 0, 0)),
        ],
        out_specs=pl.BlockSpec((None, 2, H, W), lambda b: (b, 0, 0, 0)),
        compiler_params=pltpu.CompilerParams(dimension_semantics=("parallel",)),
    )(index_arr, m_flat, KT, depth_f)

    flat_idx = (pcoord[:, 0] * W + pcoord[:, 1]).reshape(B, HW)   # for callers / reference
    # Flatten to 1D so the SMEM scalar-prefetch buffer is not padded to 8 rows.
    # TODO(synk): at realistic H*W (e.g. 256x256) block this per batch instead of
    #             prefetching the whole (B*2*HW,) table into SMEM.
    idx_smem = pcoord.reshape(B * 2 * HW)

    # ----- kernel B: scatter + 2x2 max-pool (upsample moved to glue) -----
    image_t = jnp.transpose(image, (0, 2, 3, 1)).reshape(B, HW, C).astype(jnp.float32)
    fill_value = 1.0 if fill_empty_with_ones else 0.0

    # Explicit VMEM budget (double-buffered in/out blocks + scratches), for v7x's 64 MiB.
    vmem_need = (2 * _padded_vmem_bytes((HW, C))
                 + 2 * _padded_vmem_bytes((H // 2, W // 2, C))
                 + _padded_vmem_bytes((H, W, C))
                 + _padded_vmem_bytes((H // 2, W, C)))
    vmem_limit = int(min(max(2 * vmem_need + (4 << 20), 32 << 20), 48 << 20))
    # TODO(synk): for small C (e.g. 4) at large H*W, the channels-last lane padding
    #             (C -> 128 lanes) dominates VMEM; pack W into the lane axis or tile C.

    pooled = pl.pallas_call(
        functools.partial(_scatter_pool_kernel, H, W, C, fill_value),
        out_shape=jax.ShapeDtypeStruct((B, H // 2, W // 2, C), jnp.float32),
        grid_spec=pltpu.PrefetchScalarGridSpec(
            num_scalar_prefetch=1,
            grid=(B,),
            in_specs=[pl.BlockSpec((None, HW, C), lambda b, idx: (b, 0, 0))],
            out_specs=pl.BlockSpec((None, H // 2, W // 2, C),
                                   lambda b, idx: (b, 0, 0, 0)),
            scratch_shapes=[
                pltpu.VMEM((H, W, C), jnp.float32),        # scatter target
                pltpu.VMEM((H // 2, W, C), jnp.float32),   # row-pair max
            ],
        ),
        compiler_params=pltpu.CompilerParams(
            dimension_semantics=("parallel",),
            vmem_limit_bytes=vmem_limit,
        ),
    )(idx_smem, image_t)

    # glue: (B, H/2, W/2, C) -> NCHW pooled -> nearest x2 upsample -> (B, C, H, W)
    out = jnp.transpose(pooled, (0, 3, 1, 2))                   # (B, C, H/2, W/2)
    out = jnp.repeat(jnp.repeat(out, 2, axis=2), 2, axis=3)     # F.interpolate(scale=2)
    return out, flat_idx


def reference_numpy(image, flat_idx, fill_empty_with_ones):
    """NumPy reference for the scatter + maxpool + upsample, given the kernel-A indices."""
    img = np.asarray(image, dtype=np.float32)
    idx = np.asarray(flat_idx)
    B, C, H, W = img.shape
    HW = H * W
    fill = 1.0 if fill_empty_with_ones else 0.0
    img_flat = img.transpose(0, 2, 3, 1).reshape(B, HW, C)
    proj = np.full((B, HW, C), fill, dtype=np.float32)
    for b in range(B):
        for j in range(HW):                 # sequential -> last write wins
            proj[b, idx[b, j]] = img_flat[b, j]
    proj = proj.reshape(B, H, W, C).transpose(0, 3, 1, 2)
    pooled = proj.reshape(B, C, H // 2, 2, W // 2, 2).max(axis=(3, 5))
    return np.repeat(np.repeat(pooled, 2, axis=2), 2, axis=3)


if __name__ == "__main__":
    B, C, H, W = 2, 4, 16, 16
    key = jax.random.PRNGKey(0)
    k1, k2, k3 = jax.random.split(key, 3)

    image = jax.random.normal(k1, (B, C, H, W), dtype=jnp.float32)
    depth = jax.random.uniform(k2, (B, H, W), dtype=jnp.float32, minval=1.0, maxval=2.0)
    T = 0.1 * jax.random.normal(k3, (B, 3, 1), dtype=jnp.float32)

    # small deterministic in-plane rotations per batch element
    theta = 0.05 * (jnp.arange(B, dtype=jnp.float32) + 1.0)
    c, s = jnp.cos(theta), jnp.sin(theta)
    z, o = jnp.zeros_like(theta), jnp.ones_like(theta)
    R = jnp.stack([jnp.stack([c, -s, z], axis=-1),
                   jnp.stack([s, c, z], axis=-1),
                   jnp.stack([z, z, o], axis=-1)], axis=-2)            # (B, 3, 3)

    f = float(H)
    cx = cy = H / 2.0
    K = jnp.array([[f, 0.0, cx], [0.0, f, cy], [0.0, 0.0, 1.0]], dtype=jnp.float32)
    Kinv = jnp.array([[1.0 / f, 0.0, -cx / f],
                      [0.0, 1.0 / f, -cy / f],
                      [0.0, 0.0, 1.0]], dtype=jnp.float32)

    for fill_ones in (False, True):
        out, flat_idx = epipolar_propagation(image, depth, T, R, K, Kinv,
                                             fill_empty_with_ones=fill_ones)
        out = jax.block_until_ready(out)
        flat_idx = jax.block_until_ready(flat_idx)

        assert out.shape == (B, C, H, W) and out.dtype == jnp.float32
        idx_np = np.asarray(flat_idx)
        assert idx_np.min() >= 0 and idx_np.max() < H * W

        ref = reference_numpy(image, flat_idx, fill_empty_with_ones=fill_ones)
        np.testing.assert_allclose(np.asarray(out), ref, rtol=1e-5, atol=1e-5)

    print("KERNEL_OK")
</pallas_src>

<mosaic_0001>
module attributes {stable_mosaic.version = 11 : i64} {
  func.func @_project_kernel(%arg0: i32, %arg1: memref<3x16x16xf32, #tpu.memory_space<vmem>>, %arg2: memref<2x9xf32, #tpu.memory_space<smem>>, %arg3: memref<2x3xf32, #tpu.memory_space<smem>>, %arg4: memref<1x16x16xf32, #tpu.memory_space<vmem>>, %arg5: memref<1x2x16x16xi32, #tpu.memory_space<vmem>>) attributes {dimension_semantics = [#tpu.dimension_semantics<parallel>], iteration_bounds = array<i64: 2>, scalar_prefetch = 0 : i64, scratch_operands = 0 : i64, tpu.core_type = #tpu.core_type<tc>, window_params = [{pipeline_mode = #tpu.pipeline_mode<synchronous>, transform_indices = @transform_0, window_bounds = array<i64: 3, 16, 16>}, {transform_indices = @transform_1, window_bounds = array<i64: 2, 9>}, {transform_indices = @transform_2, window_bounds = array<i64: 2, 3>}, {transform_indices = @transform_3, window_bounds = array<i64: 1, 16, 16>}, {transform_indices = @transform_4, window_bounds = array<i64: 1, 2, 16, 16>}]} {
    %c0 = arith.constant 0 : index
    %c0_0 = arith.constant 0 : index
    %c0_1 = arith.constant 0 : index
    %0 = vector.load %arg1[%c0, %c0_0, %c0_1] : memref<3x16x16xf32, #tpu.memory_space<vmem>>, vector<1x16x16xf32>
    %1 = vector.shape_cast %0 : vector<1x16x16xf32> to vector<16x16xf32>
    %c1 = arith.constant 1 : index
    %c0_2 = arith.constant 0 : index
    %c0_3 = arith.constant 0 : index
    %2 = vector.load %arg1[%c1, %c0_2, %c0_3] : memref<3x16x16xf32, #tpu.memory_space<vmem>>, vector<1x16x16xf32>
    %3 = vector.shape_cast %2 : vector<1x16x16xf32> to vector<16x16xf32>
    %c0_4 = arith.constant 0 : index
    %c0_5 = arith.constant 0 : index
    %c0_6 = arith.constant 0 : index
    %4 = vector.load %arg4[%c0_4, %c0_5, %c0_6] : memref<1x16x16xf32, #tpu.memory_space<vmem>>, vector<1x16x16xf32>
    %5 = vector.shape_cast %4 : vector<1x16x16xf32> to vector<16x16xf32>
    %cst = arith.constant 1.000000e+00 : f32
    %6 = vector.broadcast %cst : f32 to vector<16x16xf32>
    %7 = arith.divf %6, %5 : vector<16x16xf32>
    %8 = arith.index_cast %arg0 : i32 to index
    %c0_7 = arith.constant 0 : index
    %9 = memref.load %arg2[%8, %c0_7] : memref<2x9xf32, #tpu.memory_space<smem>>
    %10 = vector.broadcast %9 : f32 to vector<16x16xf32>
    %11 = arith.mulf %10, %1 : vector<16x16xf32>
    %12 = arith.index_cast %arg0 : i32 to index
    %c1_8 = arith.constant 1 : index
    %13 = memref.load %arg2[%12, %c1_8] : memref<2x9xf32, #tpu.memory_space<smem>>
    %14 = vector.broadcast %13 : f32 to vector<16x16xf32>
    %15 = arith.mulf %14, %3 : vector<16x16xf32>
    %16 = arith.addf %11, %15 : vector<16x16xf32>
    %17 = arith.index_cast %arg0 : i32 to index
    %c2 = arith.constant 2 : index
    %18 = memref.load %arg2[%17, %c2] : memref<2x9xf32, #tpu.memory_space<smem>>
    %19 = vector.broadcast %18 : f32 to vector<16x16xf32>
    %20 = arith.addf %16, %19 : vector<16x16xf32>
    %21 = arith.index_cast %arg0 : i32 to index
    %c0_9 = arith.constant 0 : index
    %22 = memref.load %arg3[%21, %c0_9] : memref<2x3xf32, #tpu.memory_space<smem>>
    %23 = vector.broadcast %22 : f32 to vector<16x16xf32>
    %24 = arith.mulf %23, %7 : vector<16x16xf32>
    %25 = arith.addf %20, %24 : vector<16x16xf32>
    %26 = arith.index_cast %arg0 : i32 to index
    %c3 = arith.constant 3 : index
    %27 = memref.load %arg2[%26, %c3] : memref<2x9xf32, #tpu.memory_space<smem>>
    %28 = vector.broadcast %27 : f32 to vector<16x16xf32>
    %29 = arith.mulf %28, %1 : vector<16x16xf32>
    %30 = arith.index_cast %arg0 : i32 to index
    %c4 = arith.constant 4 : index
    %31 = memref.load %arg2[%30, %c4] : memref<2x9xf32, #tpu.memory_space<smem>>
    %32 = vector.broadcast %31 : f32 to vector<16x16xf32>
    %33 = arith.mulf %32, %3 : vector<16x16xf32>
    %34 = arith.addf %29, %33 : vector<16x16xf32>
    %35 = arith.index_cast %arg0 : i32 to index
    %c5 = arith.constant 5 : index
    %36 = memref.load %arg2[%35, %c5] : memref<2x9xf32, #tpu.memory_space<smem>>
    %37 = vector.broadcast %36 : f32 to vector<16x16xf32>
    %38 = arith.addf %34, %37 : vector<16x16xf32>
    %39 = arith.index_cast %arg0 : i32 to index
    %c1_10 = arith.constant 1 : index
    %40 = memref.load %arg3[%39, %c1_10] : memref<2x3xf32, #tpu.memory_space<smem>>
    %41 = vector.broadcast %40 : f32 to vector<16x16xf32>
    %42 = arith.mulf %41, %7 : vector<16x16xf32>
    %43 = arith.addf %38, %42 : vector<16x16xf32>
    %44 = arith.index_cast %arg0 : i32 to index
    %c6 = arith.constant 6 : index
    %45 = memref.load %arg2[%44, %c6] : memref<2x9xf32, #tpu.memory_space<smem>>
    %46 = vector.broadcast %45 : f32 to vector<16x16xf32>
    %47 = arith.mulf %46, %1 : vector<16x16xf32>
    %48 = arith.index_cast %arg0 : i32 to index
    %c7 = arith.constant 7 : index
    %49 = memref.load %arg2[%48, %c7] : memref<2x9xf32, #tpu.memory_space<smem>>
    %50 = vector.broadcast %49 : f32 to vector<16x16xf32>
    %51 = arith.mulf %50, %3 : vector<16x16xf32>
    %52 = arith.addf %47, %51 : vector<16x16xf32>
    %53 = arith.index_cast %arg0 : i32 to index
    %c8 = arith.constant 8 : index
    %54 = memref.load %arg2[%53, %c8] : memref<2x9xf32, #tpu.memory_space<smem>>
    %55 = vector.broadcast %54 : f32 to vector<16x16xf32>
    %56 = arith.addf %52, %55 : vector<16x16xf32>
    %57 = arith.index_cast %arg0 : i32 to index
    %c2_11 = arith.constant 2 : index
    %58 = memref.load %arg3[%57, %c2_11] : memref<2x3xf32, #tpu.memory_space<smem>>
    %59 = vector.broadcast %58 : f32 to vector<16x16xf32>
    %60 = arith.mulf %59, %7 : vector<16x16xf32>
    %61 = arith.addf %56, %60 : vector<16x16xf32>
    %62 = arith.divf %25, %61 : vector<16x16xf32>
    %cst_12 = arith.constant 0.000000e+00 : f32
    %cst_13 = arith.constant 1.500000e+01 : f32
    %63 = vector.broadcast %cst_12 : f32 to vector<16x16xf32>
    %64 = arith.maximumf %63, %62 : vector<16x16xf32>
    %65 = vector.broadcast %cst_13 : f32 to vector<16x16xf32>
    %66 = arith.minimumf %65, %64 : vector<16x16xf32>
    %67 = arith.fptosi %66 : vector<16x16xf32> to vector<16x16xi32>
    %c0_14 = arith.constant 0 : index
    %c0_15 = arith.constant 0 : index
    %c0_16 = arith.constant 0 : index
    %c0_17 = arith.constant 0 : index
    %68 = vector.load %arg5[%c0_14, %c0_15, %c0_16, %c0_17] : memref<1x2x16x16xi32, #tpu.memory_space<vmem>>, vector<1x1x16x16xi32>
    %69 = vector.shape_cast %68 : vector<1x1x16x16xi32> to vector<16x16xi32>
    %70 = vector.shape_cast %67 : vector<16x16xi32> to vector<1x1x16x16xi32>
    tpu.vector_store %arg5[%c0_14, %c0_15, %c0_16, %c0_17], %70 {strides = array<i32>} : memref<1x2x16x16xi32, #tpu.memory_space<vmem>>, vector<1x1x16x16xi32>,
    %71 = arith.divf %43, %61 : vector<16x16xf32>
    %cst_18 = arith.constant 0.000000e+00 : f32
    %cst_19 = arith.constant 1.500000e+01 : f32
    %72 = vector.broadcast %cst_18 : f32 to vector<16x16xf32>
    %73 = arith.maximumf %72, %71 : vector<16x16xf32>
    %74 = vector.broadcast %cst_19 : f32 to vector<16x16xf32>
    %75 = arith.minimumf %74, %73 : vector<16x16xf32>
    %76 = arith.fptosi %75 : vector<16x16xf32> to vector<16x16xi32>
    %c0_20 = arith.constant 0 : index
    %c1_21 = arith.constant 1 : index
    %c0_22 = arith.constant 0 : index
    %c0_23 = arith.constant 0 : index
    %77 = vector.load %arg5[%c0_20, %c1_21, %c0_22, %c0_23] : memref<1x2x16x16xi32, #tpu.memory_space<vmem>>, vector<1x1x16x16xi32>
    %78 = vector.shape_cast %77 : vector<1x1x16x16xi32> to vector<16x16xi32>
    %79 = vector.shape_cast %76 : vector<16x16xi32> to vector<1x1x16x16xi32>
    tpu.vector_store %arg5[%c0_20, %c1_21, %c0_22, %c0_23], %79 {strides = array<i32>} : memref<1x2x16x16xi32, #tpu.memory_space<vmem>>, vector<1x1x16x16xi32>,
    return
  }
  func.func @transform_0(%arg0: i32) -> (i32, i32, i32) {
    %c0_i32 = arith.constant 0 : i32
    %c0_i32_0 = arith.constant 0 : i32
    %c0_i32_1 = arith.constant 0 : i32
    %c0_i32_2 = arith.constant 0 : i32
    return %c0_i32, %c0_i32_0, %c0_i32_1 : i32, i32, i32
  }
  func.func @transform_1(%arg0: i32) -> (i32, i32) {
    %c0_i32 = arith.constant 0 : i32
    %c0_i32_0 = arith.constant 0 : i32
    %c0_i32_1 = arith.constant 0 : i32
    return %c0_i32, %c0_i32_0 : i32, i32
  }
  func.func @transform_2(%arg0: i32) -> (i32, i32) {
    %c0_i32 = arith.constant 0 : i32
    %c0_i32_0 = arith.constant 0 : i32
    %c0_i32_1 = arith.constant 0 : i32
    return %c0_i32, %c0_i32_0 : i32, i32
  }
  func.func @transform_3(%arg0: i32) -> (i32, i32, i32) {
    %c0_i32 = arith.constant 0 : i32
    %c0_i32_0 = arith.constant 0 : i32
    %c0_i32_1 = arith.constant 0 : i32
    return %arg0, %c0_i32, %c0_i32_0 : i32, i32, i32
  }
  func.func @transform_4(%arg0: i32) -> (i32, i32, i32, i32) {
    %c0_i32 = arith.constant 0 : i32
    %c0_i32_0 = arith.constant 0 : i32
    %c0_i32_1 = arith.constant 0 : i32
    %c0_i32_2 = arith.constant 0 : i32
    return %arg0, %c0_i32, %c0_i32_0, %c0_i32_1 : i32, i32, i32, i32
  }
}

</mosaic_0001>

<llo_original>
// kernel: tpu_custom_call.1
$region0: #{tpu_custom_call.1}
  #allocation0 [shape = 'u32[]', space=smem, size = 0x4, offset = 0x4, fixed_abs, tag = 'smem constant byte address 0x4 - core index']
  #allocation1 [shape = 'u32[144,128]{1,0:T(1,128)}', space=vmem, size = 0x12000, scoped, tag = 'internal scratch']
  %s0 = inlined_call_operand.hbm [shape: f32[3,16,16], index: 0, kind: input, shape index: {}]
  %s1 = inlined_call_operand.vmem [shape: f32[2,9], index: 1, kind: input, shape index: {}]
  %s2 = inlined_call_operand.vmem [shape: f32[2,3], index: 2, kind: input, shape index: {}]
  %s3 = inlined_call_operand.hbm [shape: f32[2,16,16], index: 3, kind: input, shape index: {}]
  %s4 = inlined_call_operand.hbm [shape: s32[2,2,16,16], index: 4, kind: output, shape index: {}]
  %s5 = sld [smem:[#allocation0]]
  $region65: #{tpu_custom_call.1} parent=0
    _
  %s7 = ssub.s32 1, %s5
  %s8 = scalar_select 0, %s7, %s5
  $region1: #{tpu_custom_call.1} parent=0
    #allocation2 [shape = 'u8[24576]{0}', space=vmem, size = 0x6000, scoped, tag = 'input window, operand 0, single buffered']
    #allocation3 [shape = 's32[2]{0}', space=sflag, size = 0x8, scoped, tag = 'scoped memory for tpu_custom_call.1']
    #allocation4 [shape = 's32[2]{0}', space=sflag, size = 0x8, scoped, tag = 'scoped memory for tpu_custom_call.1']
    #allocation5 [shape = 's32[2]{0}', space=sflag, size = 0x8, scoped, tag = 'scoped memory for tpu_custom_call.1']
    #allocation6 [shape = 'u8[1024]{0}', space=smem, size = 0x400, scoped, tag = 'input window, operand 1, single buffered']
    #allocation7 [shape = 'u8[1024]{0}', space=smem, size = 0x400, scoped, tag = 'input window, operand 2, single buffered']
    #allocation8 [shape = 's32[1]{0}', space=sflag, size = 0x4, scoped, tag = 'scoped memory for tpu_custom_call.1']
    #allocation9 [shape = 'u8[16384]{0}', space=vmem, size = 0x4000, scoped, tag = 'input window, operand 3']
    #allocation10 [shape = 's32[2]{0}', space=sflag, size = 0x8, scoped, tag = 'scoped memory for tpu_custom_call.1']
    #allocation11 [shape = 'u8[32768]{0}', space=vmem, size = 0x8000, scoped, tag = 'output window, operand 0']
    %9 = vsyncpa [#allocation3], 0
    %10 = vsyncpa [#allocation5], 0
    %11 = vsyncpa [#allocation8], 0
    %12 = vsyncpa [#allocation10], 0
    %s13 = scalar_lea.sflag [#allocation10], 1
    %14 = vsyncpa %s13, 0
    %15 = vsyncpa [#allocation4], 0
    %s16 = scalar_lea.sflag [#allocation4], 1
    %17 = vsyncpa %s16, 0
    loop: start=0, step=1, limit=4
    $region2: #{tpu_custom_call.1} parent=1 // loop_pre_header
      _
    $region3: #{tpu_custom_call.1} parent=1 // loop_header
      %s19 = sphi 0, %s23
      %p20 = scmp.ge.s32.totalorder %s19, 4
      %s27 = sphi 0, %s27
      %s29 = sphi 0, %s27
      %s30 = sphi 0, %s29
      %s44 = sphi 0, %s30
      %s48 = sphi 0, %s48
      %s50 = sphi 0, %s48
      %s51 = sphi 0, %s50
      %s65 = sphi 0, %s51
      %s69 = sphi 0, %s69
      %s71 = sphi 0, %s69
      %s72 = sphi 0, %s71
      %s86 = sphi 0, %s72
      %s92 = sphi 0, %s94
      %s95 = sphi 0, %s92
      %s96 = sphi 0, %s95
      %s112 = sphi 0, %s96
      %s118 = sphi 0, %s120
      %s121 = sphi 0, %s118
      %s122 = sphi 0, %s121
      %s138 = sphi 0, %s122
    $region4: #{tpu_custom_call.1} parent=1 // loop_header_branch
      %22 = sbr.rel (%p20) target = $region8
    $region5: #{tpu_custom_call.1} parent=1 // loop_body
      %s24 = ssub.s32 %s19, 1
      %s25 = ssub.s32 %s19, 2
      %s26 = sadd.s32 %s19, 1
      %s28 = sadd.s32 %s27, 1
      %p31 = scmp.eq.s32.totalorder %s19, 1
      %p32 = scmp.ne.s32.totalorder %s27, %s29
      %p33 = scmp.eq.s32.totalorder %s19, 0
      %p34 = por %p32, %p33
      %p35 = scmp.ne.s32.totalorder %s27, %s29
      %p36 = scmp.eq.s32.totalorder %s24, 1
      %p37 = por %p35, %p36
      %p38 = scmp.ne.s32.totalorder %s29, %s30
      %p39 = scmp.eq.s32.totalorder %s24, 0
      %p40 = por %p38, %p39
      %p41 = scmp.ne.s32.totalorder %s29, %s30
      %p42 = scmp.eq.s32.totalorder %s25, 1
      %p43 = por %p41, %p42
      %p45 = scmp.ne.s32.totalorder %s30, %s44
      %p46 = scmp.eq.s32.totalorder %s25, 0
      %p47 = por %p45, %p46
      %s49 = sadd.s32 %s48, 1
      %p52 = scmp.eq.s32.totalorder %s19, 1
      %p53 = scmp.ne.s32.totalorder %s48, %s50
      %p54 = scmp.eq.s32.totalorder %s19, 0
      %p55 = por %p53, %p54
      %p56 = scmp.ne.s32.totalorder %s48, %s50
      %p57 = scmp.eq.s32.totalorder %s24, 1
      %p58 = por %p56, %p57
      %p59 = scmp.ne.s32.totalorder %s50, %s51
      %p60 = scmp.eq.s32.totalorder %s24, 0
      %p61 = por %p59, %p60
      %p62 = scmp.ne.s32.totalorder %s50, %s51
      %p63 = scmp.eq.s32.totalorder %s25, 1
      %p64 = por %p62, %p63
      %p66 = scmp.ne.s32.totalorder %s51, %s65
      %p67 = scmp.eq.s32.totalorder %s25, 0
      %p68 = por %p66, %p67
      %s70 = sadd.s32 %s69, 1
      %p73 = scmp.eq.s32.totalorder %s19, 1
      %p74 = scmp.ne.s32.totalorder %s69, %s71
      %p75 = scmp.eq.s32.totalorder %s19, 0
      %p76 = por %p74, %p75
      %p77 = scmp.ne.s32.totalorder %s69, %s71
      %p78 = scmp.eq.s32.totalorder %s24, 1
      %p79 = por %p77, %p78
      %p80 = scmp.ne.s32.totalorder %s71, %s72
      %p81 = scmp.eq.s32.totalorder %s24, 0
      %p82 = por %p80, %p81
      %p83 = scmp.ne.s32.totalorder %s71, %s72
      %p84 = scmp.eq.s32.totalorder %s25, 1
      %p85 = por %p83, %p84
      %p87 = scmp.ne.s32.totalorder %s72, %s86
      %p88 = scmp.eq.s32.totalorder %s25, 0
      %p89 = por %p87, %p88
      %s90 = ssub.s32 %s19, %s26
      %p91 = scmp.eq.s32.totalorder %s90, 0
      %s93 = sadd.s32 %s92, 1
      %s94 = scalar_select %p91, %s92, %s93
      %p97 = pneg %p91
      %p98 = scmp.eq.s32.totalorder %s19, 1
      %p99 = por %p97, %p98
      %p100 = scmp.ne.s32.totalorder %s92, %s95
      %p101 = scmp.eq.s32.totalorder %s19, 0
      %p102 = por %p100, %p101
      %p103 = scmp.ne.s32.totalorder %s92, %s95
      %p104 = scmp.eq.s32.totalorder %s24, 1
      %p105 = por %p103, %p104
      %p106 = scmp.ne.s32.totalorder %s95, %s96
      %p107 = scmp.eq.s32.totalorder %s24, 0
      %p108 = por %p106, %p107
      %p109 = scmp.ne.s32.totalorder %s95, %s96
      %p110 = scmp.eq.s32.totalorder %s25, 1
      %p111 = por %p109, %p110
      %p113 = scmp.ne.s32.totalorder %s96, %s112
      %p114 = scmp.eq.s32.totalorder %s25, 0
      %p115 = por %p113, %p114
      %s116 = ssub.s32 %s19, %s26
      %p117 = scmp.eq.s32.totalorder %s116, 0
      %s119 = sadd.s32 %s118, 1
      %s120 = scalar_select %p117, %s118, %s119
      %p123 = pneg %p117
      %p124 = scmp.eq.s32.totalorder %s19, 1
      %p125 = por %p123, %p124
      %p126 = scmp.ne.s32.totalorder %s118, %s121
      %p127 = scmp.eq.s32.totalorder %s19, 0
      %p128 = por %p126, %p127
      %p129 = scmp.ne.s32.totalorder %s118, %s121
      %p130 = scmp.eq.s32.totalorder %s24, 1
      %p131 = por %p129, %p130
      %p132 = scmp.ne.s32.totalorder %s121, %s122
      %p133 = scmp.eq.s32.totalorder %s24, 0
      %p134 = por %p132, %p133
      %p135 = scmp.ne.s32.totalorder %s121, %s122
      %p136 = scmp.eq.s32.totalorder %s25, 1
      %p137 = por %p135, %p136
      %p139 = scmp.ne.s32.totalorder %s122, %s138
      %p140 = scmp.eq.s32.totalorder %s25, 0
      %p141 = por %p139, %p140
      %p142 = scmp.le.s32.totalorder 1, %s19
      %p143 = scmp.lt.s32.totalorder %s19, 3
      %p144 = pnand %p142, %p143
      %p145 = pneg %p144
      // Predicated region
      $region9: #{tpu_custom_call.1} parent=5 // pred_check
        _
      $region10: #{tpu_custom_call.1} parent=5 // pred_check_branch
        %147 = sbr.rel (%p144) target = $region12
      $region11: #{tpu_custom_call.1} parent=5 // pred_region
        %s148 = ssub.s32 %s19, 1
        // Predicated region
        $region13: #{tpu_custom_call.1} parent=11 // pred_check
          %p149 = pneg %p40
        $region14: #{tpu_custom_call.1} parent=11 // pred_check_branch
          %151 = sbr.rel (%p149) target = $region16
        $region15: #{tpu_custom_call.1} parent=11 // pred_region
          %s153 = ssub.s32 768, 768
          %154 = vsyncadd [#allocation3], %s153
          %s155 = sshll.u32 [#allocation2], 4
          %s156 = int_to_ptr.vmem [resolvable:$true] %s155
          %161 = dma.hbm_to_vmem [thread:$0]  %s0, 768, %s156, [#allocation3], 128, 128, 8
        $region16: #{tpu_custom_call.1} parent=11 // pred_fallthru
          _
        // Predicated region
        $region17: #{tpu_custom_call.1} parent=11 // pred_check
          %p162 = pneg %p61
        $region18: #{tpu_custom_call.1} parent=11 // pred_check_branch
          %164 = sbr.rel (%p162) target = $region20
        $region19: #{tpu_custom_call.1} parent=11 // pred_region
          %s166 = ssub.s32 32, 32
          %167 = vsyncadd [#allocation5], %s166
          %s169 = sshll.u32 %s1, 4
          %s170 = int_to_ptr.vmem [resolvable:$true] %s169
          %172 = dma.vmem_to_smem %s170, 32, [#allocation6], [#allocation5]
        $region20: #{tpu_custom_call.1} parent=11 // pred_fallthru
          _
        // Predicated region
        $region21: #{tpu_custom_call.1} parent=11 // pred_check
          %p173 = pneg %p82
        $region22: #{tpu_custom_call.1} parent=11 // pred_check_branch
          %175 = sbr.rel (%p173) target = $region24
        $region23: #{tpu_custom_call.1} parent=11 // pred_region
          %s177 = ssub.s32 32, 32
          %178 = vsyncadd [#allocation8], %s177
          %s180 = sshll.u32 %s2, 4
          %s181 = int_to_ptr.vmem [resolvable:$true] %s180
          %183 = dma.vmem_to_smem %s181, 32, [#allocation7], [#allocation8]
        $region24: #{tpu_custom_call.1} parent=11 // pred_fallthru
          _
      $region12: #{tpu_custom_call.1} parent=5 // pred_fallthru
        _
      %p184 = scmp.lt.s32.totalorder %s19, 2
      // Predicated region
      $region25: #{tpu_custom_call.1} parent=5 // pred_check
        %p185 = pneg %p184
      $region26: #{tpu_custom_call.1} parent=5 // pred_check_branch
        %187 = sbr.rel (%p185) target = $region28
      $region27: #{tpu_custom_call.1} parent=5 // pred_region
        // Predicated region
        $region29: #{tpu_custom_call.1} parent=27 // pred_check
          %p188 = pneg %p102
        $region30: #{tpu_custom_call.1} parent=27 // pred_check_branch
          %190 = sbr.rel (%p188) target = $region32
        $region31: #{tpu_custom_call.1} parent=27 // pred_region
          %s191 = sand.u32 %s92, 1
          %s192 = scalar_lea.sflag [#allocation10], %s191
          %s193 = sand.u32 %s92, 1
          %s194 = smul.addr %s193, 16
          %s195 = scalar_lea.vmem [#allocation9], %s194
          %s197 = ssub.s32 256, 256
          %198 = vsyncadd %s192, %s197
          %s199 = smul.addr %s19, 2
          %s200 = smul.addr %s199, 128
          %s201 = scalar_lea.hbm %s3, %s200
          %s202 = sshll.u32 %s195, 4
          %s203 = int_to_ptr.vmem [resolvable:$true] %s202
          %208 = dma.hbm_to_vmem [thread:$0]  %s201, 256, %s203, %s192, 128, 128, 8
        $region32: #{tpu_custom_call.1} parent=27 // pred_fallthru
          _
      $region28: #{tpu_custom_call.1} parent=5 // pred_fallthru
        _
      %p209 = scmp.le.s32.totalorder 1, %s19
      %p210 = scmp.lt.s32.totalorder %s19, 3
      %p211 = pnand %p209, %p210
      %p212 = pneg %p211
      // Predicated region
      $region33: #{tpu_custom_call.1} parent=5 // pred_check
        _
      $region34: #{tpu_custom_call.1} parent=5 // pred_check_branch
        %214 = sbr.rel (%p211) target = $region36
      $region35: #{tpu_custom_call.1} parent=5 // pred_region
        %s215 = ssub.s32 %s19, 1
        // Predicated region
        $region37: #{tpu_custom_call.1} parent=35 // pred_check
          %p216 = pneg %p40
        $region38: #{tpu_custom_call.1} parent=35 // pred_check_branch
          %218 = sbr.rel (%p216) target = $region40
        $region39: #{tpu_custom_call.1} parent=35 // pred_region
          %219 = dma.done [#allocation3], 768
        $region40: #{tpu_custom_call.1} parent=35 // pred_fallthru
          _
        // Predicated region
        $region41: #{tpu_custom_call.1} parent=35 // pred_check
          %p220 = pneg %p61
        $region42: #{tpu_custom_call.1} parent=35 // pred_check_branch
          %222 = sbr.rel (%p220) target = $region44
        $region43: #{tpu_custom_call.1} parent=35 // pred_region
          %223 = dma.done [#allocation5], 32
        $region44: #{tpu_custom_call.1} parent=35 // pred_fallthru
          _
        // Predicated region
        $region45: #{tpu_custom_call.1} parent=35 // pred_check
          %p224 = pneg %p82
        $region46: #{tpu_custom_call.1} parent=35 // pred_check_branch
          %226 = sbr.rel (%p224) target = $region48
        $region47: #{tpu_custom_call.1} parent=35 // pred_region
          %227 = dma.done [#allocation8], 32
        $region48: #{tpu_custom_call.1} parent=35 // pred_fallthru
          _
        %s228 = sand.u32 %s95, 1
        %s229 = scalar_lea.sflag [#allocation10], %s228
        %s230 = sand.u32 %s95, 1
        %s231 = smul.addr %s230, 16
        %s232 = scalar_lea.vmem [#allocation9], %s231
        // Predicated region
        $region49: #{tpu_custom_call.1} parent=35 // pred_check
          %p233 = pneg %p108
        $region50: #{tpu_custom_call.1} parent=35 // pred_check_branch
          %235 = sbr.rel (%p233) target = $region52
        $region51: #{tpu_custom_call.1} parent=35 // pred_region
          %236 = dma.done %s229, 256
        $region52: #{tpu_custom_call.1} parent=35 // pred_fallthru
          _
        %237 = sfence
        %p238 = pneg %p40
        %p239 = pneg %p37
        %p240 = pneg %p61
        %p241 = pneg %p58
        %p242 = pneg %p82
        %p243 = pneg %p79
        %s244 = sand.u32 %s95, 1
        %s245 = scalar_lea.sflag [#allocation10], %s244
        %s246 = sand.u32 %s95, 1
        %s247 = smul.addr %s246, 16
        %s248 = scalar_lea.vmem [#allocation9], %s247
        %p249 = pneg %p108
        %p250 = pneg %p105
        %p251 = pneg %p134
        %p252 = pneg %p131
        %s253 = sand.u32 %s121, 1
        %s254 = scalar_lea.sflag [#allocation4], %s253
        %s255 = sand.u32 %s121, 1
        %s256 = smul.addr %s255, 32
        %s257 = scalar_lea.vmem [#allocation11], %s256
        %v258 = vld [vmem:[#allocation2] sm:$0xff]
        %v259 = vld [vmem:[#allocation2 + $0x8] sm:$0xff]
        %s260 = scalar_lea.vmem [#allocation2], 16
        %v261 = vld [vmem:[%s260] sm:$0xff]
        %v262 = vld [vmem:[%s260 + $0x8] sm:$0xff]
        %v263 = vld [vmem:[%s232] sm:$0xff]
        %v264 = vld [vmem:[%s232 + $0x8] sm:$0xff]
        %v265 = vrcp.pop %v263
        %v266 = vmul.f32 1.0, %v265
        %v267 = vrcp.pop %v264
        %v268 = vmul.f32 1.0, %v267
        %s269 = smul.u32 %s24, 128
        %s270 = sld [smem:[#allocation6 + %s269]]
        %v271 = vstv %s270
        %v272 = vmul.f32 %v271, %v258
        %v273 = vmul.f32 %v271, %v259
        %s274 = sadd.s32 %s269, 1
        %s275 = sld [smem:[#allocation6 + %s274]]
        %v276 = vstv %s275
        %v277 = vmul.f32 %v276, %v261
        %v278 = vmul.f32 %v276, %v262
        %v279 = vadd.f32 %v272, %v277
        %v280 = vadd.f32 %v273, %v278
        %s281 = sadd.s32 %s269, 2
        %s282 = sld [smem:[#allocation6 + %s281]]
        %v283 = vstv %s282
        %v284 = vadd.f32 %v279, %v283
        %v285 = vadd.f32 %v280, %v283
        %s286 = sld [smem:[#allocation7 + %s269]]
        %v287 = vstv %s286
        %v288 = vmul.f32 %v287, %v266
        %v289 = vmul.f32 %v287, %v268
        %v290 = vadd.f32 %v284, %v288
        %v291 = vadd.f32 %v285, %v289
        %s292 = sadd.s32 %s269, 3
        %s293 = sld [smem:[#allocation6 + %s292]]
        %v294 = vstv %s293
        %v295 = vmul.f32 %v294, %v258
        %v296 = vmul.f32 %v294, %v259
        %s297 = sadd.s32 %s269, 4
        %s298 = sld [smem:[#allocation6 + %s297]]
        %v299 = vstv %s298
        %v300 = vmul.f32 %v299, %v261
        %v301 = vmul.f32 %v299, %v262
        %v302 = vadd.f32 %v295, %v300
        %v303 = vadd.f32 %v296, %v301
        %s304 = sadd.s32 %s269, 5
        %s305 = sld [smem:[#allocation6 + %s304]]
        %v306 = vstv %s305
        %v307 = vadd.f32 %v302, %v306
        %v308 = vadd.f32 %v303, %v306
        %s309 = sld [smem:[#allocation7 + %s274]]
        %v310 = vstv %s309
        %v311 = vmul.f32 %v310, %v266
        %v312 = vmul.f32 %v310, %v268
        %v313 = vadd.f32 %v307, %v311
        %v314 = vadd.f32 %v308, %v312
        %s315 = sadd.s32 %s269, 6
        %s316 = sld [smem:[#allocation6 + %s315]]
        %v317 = vstv %s316
        %v318 = vmul.f32 %v317, %v258
        %v319 = vmul.f32 %v317, %v259
        %s320 = sadd.s32 %s269, 7
        %s321 = sld [smem:[#allocation6 + %s320]]
        %v322 = vstv %s321
        %v323 = vmul.f32 %v322, %v261
        %v324 = vmul.f32 %v322, %v262
        %v325 = vadd.f32 %v318, %v323
        %v326 = vadd.f32 %v319, %v324
        %s327 = sadd.s32 %s269, 8
        %s328 = sld [smem:[#allocation6 + %s327]]
        %v329 = vstv %s328
        %v330 = vadd.f32 %v325, %v329
        %v331 = vadd.f32 %v326, %v329
        %s332 = sld [smem:[#allocation7 + %s281]]
        %v333 = vstv %s332
        %v334 = vmul.f32 %v333, %v266
        %v335 = vmul.f32 %v333, %v268
        %v336 = vadd.f32 %v330, %v334
        %v337 = vadd.f32 %v331, %v335
        %v338 = vrcp.pop %v336
        %v339 = vmul.f32 %v290, %v338
        %v340 = vrcp.pop %v337
        %v341 = vmul.f32 %v291, %v340
        %v342 = vmax.f32 %v339, 0.0
        %v343 = vmax.f32 %v341, 0.0
        %v344 = vmin.f32 %v342, 15.0
        %v345 = vmin.f32 %v343, 15.0
        %v346 = vcvt.f32.s32.to.zero.pseudo %v344
        %v347 = vcvt.f32.s32.to.zero.pseudo %v345
        %vm348 = vcmask 130048
        %349 = vst.msk [vmem:[%s257] sm:$0xff] %vm348, %v346
        %350 = vst.msk [vmem:[%s257 + $0x8] sm:$0xff] %vm348, %v347
        %v351 = vmul.f32 %v313, %v338
        %v352 = vmul.f32 %v314, %v340
        %v353 = vmax.f32 %v351, 0.0
        %v354 = vmax.f32 %v352, 0.0
        %v355 = vmin.f32 %v353, 15.0
        %v356 = vmin.f32 %v354, 15.0
        %v357 = vcvt.f32.s32.to.zero.pseudo %v355
        %v358 = vcvt.f32.s32.to.zero.pseudo %v356
        %s359 = scalar_lea.vmem %s257, 16 [#allocation11]
        %360 = vst.msk [vmem:[%s359] sm:$0xff] %vm348, %v357
        %361 = vst.msk [vmem:[%s359 + $0x8] sm:$0xff] %vm348, %v358
        %s362 = sand.u32 %s121, 1
        %s363 = scalar_lea.sflag [#allocation4], %s362
        %s364 = sand.u32 %s121, 1
        %s365 = smul.addr %s364, 32
        %s366 = scalar_lea.vmem [#allocation11], %s365
        // Predicated region
        $region53: #{tpu_custom_call.1} parent=35 // pred_check
          %p367 = pneg %p131
        $region54: #{tpu_custom_call.1} parent=35 // pred_check_branch
          %369 = sbr.rel (%p367) target = $region56
        $region55: #{tpu_custom_call.1} parent=35 // pred_region
          %s371 = ssub.s32 512, 512
          %372 = vsyncadd %s363, %s371
          %s373 = smul.addr %s24, 4
          %s374 = smul.addr %s373, 128
          %s375 = scalar_lea.hbm %s4, %s374
          %s376 = sshll.u32 %s366, 4
          %s377 = int_to_ptr.vmem [resolvable:$true] %s376
          %382 = dma.vmem_to_hbm [thread:$0]  %s377, 512, %s375, %s363, 128, 128, 8
        $region56: #{tpu_custom_call.1} parent=35 // pred_fallthru
          _
      $region36: #{tpu_custom_call.1} parent=5 // pred_fallthru
        _
      %p383 = scmp.le.s32.totalorder 2, %s19
      // Predicated region
      $region57: #{tpu_custom_call.1} parent=5 // pred_check
        %p384 = pneg %p383
      $region58: #{tpu_custom_call.1} parent=5 // pred_check_branch
        %386 = sbr.rel (%p384) target = $region60
      $region59: #{tpu_custom_call.1} parent=5 // pred_region
        %s387 = ssub.s32 %s19, 2
        // Predicated region
        $region61: #{tpu_custom_call.1} parent=59 // pred_check
          %p388 = pneg %p137
        $region62: #{tpu_custom_call.1} parent=59 // pred_check_branch
          %390 = sbr.rel (%p388) target = $region64
        $region63: #{tpu_custom_call.1} parent=59 // pred_region
          %s391 = sand.u32 %s122, 1
          %s392 = scalar_lea.sflag [#allocation4], %s391
          %s393 = sand.u32 %s122, 1
          %s394 = smul.addr %s393, 32
          %s395 = scalar_lea.vmem [#allocation11], %s394
          %396 = dma.done %s392, 512
        $region64: #{tpu_custom_call.1} parent=59 // pred_fallthru
          _
      $region60: #{tpu_custom_call.1} parent=5 // pred_fallthru
        _
    $region6: #{tpu_custom_call.1} parent=1 // loop_footer
      %s23 = sadd.s32 1, %s19
    $region7: #{tpu_custom_call.1} parent=1 // loop_footer_branch
      %18 = sbr.rel target = $region3
    $region8: #{tpu_custom_call.1} parent=1 // loop_exit
      _
    %397 = vsyncpa [#allocation3], 1
    %s398 = scalar_lea.sflag [#allocation3], 1
    %399 = vsyncpa %s398, 1
    %400 = vsyncpa [#allocation10], 1
    %s401 = scalar_lea.sflag [#allocation10], 1
    %402 = vsyncpa %s401, 1
    %403 = vsyncpa [#allocation4], 1
    %s404 = scalar_lea.sflag [#allocation4], 1
    %405 = vsyncpa %s404, 1
    %406 = vsyncpa [#allocation5], 1
    %s407 = scalar_lea.sflag [#allocation5], 1
    %408 = vsyncpa %s407, 1
    %409 = vsyncpa [#allocation8], 1

</llo_original>
